<compile_context>
chip_gen: v5e
topology: v5e:2x2
jax: 0.10.0
libtpu: 0.0.40
codegen_flags: <defaults>
</compile_context>

<pallas_src>
import jax
import jax.numpy as jnp
from jax.experimental import pallas as pl
from jax.experimental.pallas import tpu as pltpu

_LANE = 128


def _round_up(x, m):
    return (x + m - 1) // m * m


def _sublane_pack(dtype):
    """Rows packed per 32-bit sublane for this dtype (f32->8, bf16->16, int8->32)."""
    return 8 * max(1, 4 // jnp.dtype(dtype).itemsize)


def _vmem_capacity_bytes():
    try:
        cap = int(pltpu.get_tpu_info().vmem_capacity_bytes)
        if cap > 0:
            return cap
    except Exception:
        pass
    return 64 << 20  # conservative fallback (v7x per-core VMEM)


def _batch_dim_semantics():
    """CORE_PARALLEL on multi-TensorCore chips (v7x); plain parallel otherwise."""
    kind = ""
    try:
        kind = jax.devices()[0].device_kind.lower()
    except Exception:
        pass
    if "v7" in kind or "7x" in kind:
        core_parallel = getattr(pltpu, "CORE_PARALLEL", None)
        if core_parallel is not None:
            return (core_parallel,)
    return ("parallel",)


def _pick_tile_rows(B, D, itemsize, x_budget_bytes, sub):
    """Largest batch tile so two in-flight (TB, D) tiles fit the x VMEM budget."""
    max_rows = max(sub, x_budget_bytes // (2 * D * itemsize))
    b_pad = _round_up(B, sub)
    if b_pad <= max_rows:
        return b_pad  # single tile covers the whole (padded) batch
    return max(_LANE, (max_rows // _LANE) * _LANE)  # multi-tile -> lane aligned


def _x_block_spec(TB, D, n_buffers):
    index_map = lambda i: (i, 0)
    if n_buffers > 2:
        try:
            return pl.BlockSpec((TB, D), index_map, pipeline_mode=pl.Buffered(n_buffers))
        except Exception:
            pass  # jax version without pipeline_mode / Buffered -> default depth 2
    return pl.BlockSpec((TB, D), index_map)


def perceptron_kernel(x_ref, w_ref, b_ref, o_ref):
    # x_ref: (TB, D) VMEM, native dtype  -- batch-row tile (pipelined)
    # w_ref: (8, D)  VMEM, same dtype    -- weight row replicated across sublanes
    # b_ref: (1,)    SMEM f32            -- bias scalar
    # o_ref: (1, TB) VMEM                -- lane-dense output row (lanes = batch)
    # (8, D) x (TB, D)^T -> (8, TB): contraction on the shared D axis, f32 acc.
    s = jax.lax.dot_general(
        w_ref[...],
        x_ref[...],
        dimension_numbers=(((1,), (1,)), ((), ())),
        preferred_element_type=jnp.float32,
    )
    # All 8 rows are identical (replicated weight); keep row 0, add bias, sigmoid.
    y = s[0:1, :] + b_ref[0]
    o_ref[...] = jax.nn.sigmoid(y).astype(o_ref.dtype)


def perceptron_forward(x, w, b, *, tile_rows=None):
    """sigmoid(x @ w + b).squeeze().  x: (B, D) f32/bf16, w: (D, 1) or (D,), b: scalar-like.

    jit-compatible (mark tile_rows static); when wrapped in a surrounding jit the
    tiny parameter plumbing (weight tile / batch pad) folds into the same program.
    """
    B, D = x.shape
    x_dtype = x.dtype
    itemsize = jnp.dtype(x_dtype).itemsize
    sub = _sublane_pack(x_dtype)

    # Parameter plumbing (tiny, shape-static).  Weight row replicated across 8
    # sublanes so the contraction is a plain full-extent-block MXU matmul.
    w_row = jnp.reshape(jnp.asarray(w), (1, D)).astype(x_dtype)
    w8 = jnp.tile(w_row, (8, 1))
    b_smem = jnp.reshape(jnp.asarray(b, jnp.float32), (1,))

    # Generation-aware VMEM budgets (explicit limit, not the scoped default).
    vmem_cap = _vmem_capacity_bytes()
    x_budget = min(40 << 20, vmem_cap // 3)                 # double-buffered x tiles
    vmem_limit = min((vmem_cap * 3) // 4, x_budget + (16 << 20))

    if tile_rows is None:
        TB = _pick_tile_rows(B, D, itemsize, x_budget, sub)
    else:
        # Validate / round user-supplied tile: multi-tile path must be 128-aligned
        # (also satisfies bf16's 16-row sublane packing).
        t = max(int(tile_rows), sub)
        b_pad_min = _round_up(B, sub)
        TB = b_pad_min if t >= b_pad_min else _round_up(t, _LANE)

    B_pad = _round_up(B, TB)
    if B_pad != B:
        x = jnp.pad(x, ((0, B_pad - B), (0, 0)))            # padded rows sliced off below
    grid = (B_pad // TB,)

    # 3-deep input buffering only for long grids with spare VMEM headroom.
    tile_bytes = TB * D * itemsize
    n_buffers = 3 if (grid[0] >= 4 and 3 * tile_bytes <= x_budget) else 2

    cost = pl.CostEstimate(
        flops=2 * B_pad * D,
        transcendentals=B_pad,
        bytes_accessed=B_pad * D * itemsize + 8 * D * itemsize + B_pad * itemsize + 4,
    )

    out = pl.pallas_call(
        perceptron_kernel,
        out_shape=jax.ShapeDtypeStruct((1, B_pad), x_dtype),
        grid=grid,
        in_specs=[
            _x_block_spec(TB, D, n_buffers),                     # x tile (pipelined)
            pl.BlockSpec((8, D), lambda i: (0, 0)),              # weight (resident)
            pl.BlockSpec(memory_space=pltpu.MemorySpace.SMEM),   # bias scalar
        ],
        out_specs=pl.BlockSpec((1, TB), lambda i: (0, i)),       # lane-dense output
        compiler_params=pltpu.CompilerParams(
            dimension_semantics=_batch_dim_semantics(),          # CORE_PARALLEL on v7x
            vmem_limit_bytes=int(vmem_limit),
        ),
        cost_estimate=cost,
    )(x, w8, b_smem)

    # Drop batch padding, then mimic torch .squeeze() (drops all size-1 dims).
    return jnp.squeeze(out[:, :B])


if __name__ == "__main__":
    key = jax.random.PRNGKey(0)
    kx, kw, kb = jax.random.split(key, 3)

    B, D = 8, 32  # batch, input_dim

    x = jax.random.normal(kx, (B, D), dtype=jnp.float32)

    # Deterministic parameter init mimicking nn.Linear's uniform(-1/sqrt(D), 1/sqrt(D)).
    bound = 1.0 / (D ** 0.5)
    w = jax.random.uniform(kw, (D, 1), dtype=jnp.float32, minval=-bound, maxval=bound)
    b = jax.random.uniform(kb, (1,), dtype=jnp.float32, minval=-bound, maxval=bound)

    # 1) Small single-tile f32 path.
    out = jax.block_until_ready(perceptron_forward(x, w, b))
    ref = jax.nn.sigmoid(x @ w + b).squeeze()
    assert out.shape == (B,)
    assert jnp.allclose(out, ref, atol=1e-5, rtol=1e-5)

    # 2) Multi-block + padded path under jit (grid > 1, B not a tile multiple).
    B2 = 300
    x2 = jax.random.normal(kx, (B2, D), dtype=jnp.float32)
    fwd = jax.jit(perceptron_forward, static_argnames=("tile_rows",))
    out2 = jax.block_until_ready(fwd(x2, w, b, tile_rows=128))
    ref2 = jax.nn.sigmoid(x2 @ w + b).squeeze()
    assert out2.shape == (B2,)
    assert jnp.allclose(out2, ref2, atol=1e-5, rtol=1e-5)

    # 3) Native bf16 streaming path (no f32 upcast) with a non-aligned tile
    #    request (validated/rounded to 128 inside the wrapper).
    x3 = x2.astype(jnp.bfloat16)
    out3 = jax.block_until_ready(perceptron_forward(x3, w, b, tile_rows=100))
    ref3 = jax.nn.sigmoid(x3.astype(jnp.float32) @ w + b).squeeze()
    assert out3.shape == (B2,)
    assert jnp.allclose(out3.astype(jnp.float32), ref3, atol=2e-2, rtol=2e-2)

    print("KERNEL_OK")
</pallas_src>

<mosaic_0001>
module attributes {stable_mosaic.version = 11 : i64} {
  func.func @perceptron_kernel(%arg0: i32, %arg1: memref<8x32xf32, #tpu.memory_space<vmem>>, %arg2: memref<8x32xf32, #tpu.memory_space<vmem>>, %arg3: memref<1xf32, #tpu.memory_space<smem>>, %arg4: memref<1x8xf32, #tpu.memory_space<vmem>>) attributes {dimension_semantics = [#tpu.dimension_semantics<parallel>], iteration_bounds = array<i64: 1>, scalar_prefetch = 0 : i64, scratch_operands = 0 : i64, tpu.core_type = #tpu.core_type<tc>, window_params = [{transform_indices = @transform_0, window_bounds = array<i64: 8, 32>}, {pipeline_mode = #tpu.pipeline_mode<synchronous>, transform_indices = @transform_1, window_bounds = array<i64: 8, 32>}, {transform_indices = @transform_2, window_bounds = array<i64: 1>}, {transform_indices = @transform_3, window_bounds = array<i64: 1, 8>}]} {
    %c0 = arith.constant 0 : index
    %c0_0 = arith.constant 0 : index
    %0 = vector.load %arg2[%c0, %c0_0] : memref<8x32xf32, #tpu.memory_space<vmem>>, vector<8x32xf32>
    %c0_1 = arith.constant 0 : index
    %c0_2 = arith.constant 0 : index
    %1 = vector.load %arg1[%c0_1, %c0_2] : memref<8x32xf32, #tpu.memory_space<vmem>>, vector<8x32xf32>
    %cst = arith.constant dense<0.000000e+00> : vector<8x8xf32>
    %2 = tpu.matmul %0, %1, %cst {dimension_numbers = #tpu.dot_dimension_numbers<[1], [1], [0], [0], [0, 0, 1, 0], [], []>} : vector<8x32xf32>, vector<8x32xf32>, vector<8x8xf32> -> vector<8x8xf32>
    %3 = vector.extract_strided_slice %2 {offsets = [0, 0], sizes = [1, 8], strides = [1, 1]} : vector<8x8xf32> to vector<1x8xf32>
    %c0_3 = arith.constant 0 : index
    %4 = memref.load %arg3[%c0_3] : memref<1xf32, #tpu.memory_space<smem>>
    %5 = vector.broadcast %4 : f32 to vector<1x8xf32>
    %6 = arith.addf %3, %5 : vector<1x8xf32>
    %7 = arith.negf %6 : vector<1x8xf32>
    %8 = math.exp %7 : vector<1x8xf32>
    %cst_4 = arith.constant 1.000000e+00 : f32
    %9 = vector.broadcast %cst_4 : f32 to vector<1x8xf32>
    %10 = arith.addf %9, %8 : vector<1x8xf32>
    %11 = arith.divf %9, %10 : vector<1x8xf32>
    %c0_5 = arith.constant 0 : index
    %c0_6 = arith.constant 0 : index
    %12 = vector.load %arg4[%c0_5, %c0_6] : memref<1x8xf32, #tpu.memory_space<vmem>>, vector<1x8xf32>
    tpu.vector_store %arg4[%c0_5, %c0_6], %11 {strides = array<i32>} : memref<1x8xf32, #tpu.memory_space<vmem>>, vector<1x8xf32>,
    return
  }
  func.func @transform_0(%arg0: i32) -> (i32, i32) {
    %c0_i32 = arith.constant 0 : i32
    %c0_i32_0 = arith.constant 0 : i32
    return %arg0, %c0_i32 : i32, i32
  }
  func.func @transform_1(%arg0: i32) -> (i32, i32) {
    %c0_i32 = arith.constant 0 : i32
    %c0_i32_0 = arith.constant 0 : i32
    %c0_i32_1 = arith.constant 0 : i32
    return %c0_i32, %c0_i32_0 : i32, i32
  }
  func.func @transform_2(%arg0: i32) -> i32 {
    %c0_i32 = arith.constant 0 : i32
    %c0_i32_0 = arith.constant 0 : i32
    return %c0_i32 : i32
  }
  func.func @transform_3(%arg0: i32) -> (i32, i32) {
    %c0_i32 = arith.constant 0 : i32
    %c0_i32_0 = arith.constant 0 : i32
    return %c0_i32, %arg0 : i32, i32
  }
}

</mosaic_0001>

<llo_original>
// kernel: tpu_custom_call.1
$region0: #{tpu_custom_call.1}
  #allocation0 [shape = 'u32[]', space=smem, size = 0x4, offset = 0x4, fixed_abs, tag = 'smem constant byte address 0x4 - core index']
  #allocation1 [shape = 'u32[72,128]{1,0:T(1,128)}', space=vmem, size = 0x9000, scoped, tag = 'internal scratch']
  #allocation2 [shape = 'f32[1]{0:T(128)S(6)}', space=smem, size = 0x200, scoped, tag = 'scoped memory for tpu_custom_call.1']
  %s0 = inlined_call_operand.hbm [shape: f32[8,32], index: 0, kind: input, shape index: {}]
  %s1 = inlined_call_operand.hbm [shape: f32[8,32], index: 1, kind: input, shape index: {}]
  %s2 = inlined_call_operand.<no memory space> [shape: f32[1], index: 2, kind: input, shape index: {}]
  %s3 = inlined_call_operand.hbm [shape: f32[1,8], index: 3, kind: output, shape index: {}]
  %s4 = sld [smem:[#allocation0]]
  $region30: #{tpu_custom_call.1} parent=0
    _
  %s6 = ssub.s32 1, %s4
  %s7 = scalar_select 0, %s6, %s4
  %8 = sst [smem:[#allocation2]] %s2
  $region1: #{tpu_custom_call.1} parent=0
    #allocation3 [shape = 'u8[4096]{0}', space=vmem, size = 0x1000, scoped, tag = 'input window, operand 0, single buffered']
    #allocation4 [shape = 's32[1]{0}', space=sflag, size = 0x4, scoped, tag = 'scoped memory for tpu_custom_call.1']
    #allocation5 [shape = 's32[1]{0}', space=sflag, size = 0x4, scoped, tag = 'scoped memory for tpu_custom_call.1']
    #allocation6 [shape = 'u8[4096]{0}', space=vmem, size = 0x1000, scoped, tag = 'input window, operand 1, single buffered']
    #allocation7 [shape = 's32[1]{0}', space=sflag, size = 0x4, scoped, tag = 'scoped memory for tpu_custom_call.1']
    #allocation8 [shape = 'u8[512]{0}', space=vmem, size = 0x400, scoped, tag = 'output window, operand 0, single buffered']
    %9 = vsyncpa [#allocation4], 0
    %10 = vsyncpa [#allocation7], 0
    %11 = vsyncpa [#allocation5], 0
    // Predicated region
    $region2: #{tpu_custom_call.1} parent=1 // pred_check
      _
    $region3: #{tpu_custom_call.1} parent=1 // pred_check_branch
      %13 = sbr.rel (0) target = $region5
    $region4: #{tpu_custom_call.1} parent=1 // pred_region
      %15 = vsyncadd [#allocation4], 0
      %s17 = sshll.u32 %s0, 4
      %s18 = int_to_ptr.hbm [resolvable:$true] %s17
      %s19 = sshll.u32 [#allocation3], 4
      %s20 = int_to_ptr.vmem [resolvable:$true] %s19
      %22 = dma.hbm_to_vmem [thread:$0]  %s18, 128, %s20, [#allocation4]
    $region5: #{tpu_custom_call.1} parent=1 // pred_fallthru
      _
    // Predicated region
    $region6: #{tpu_custom_call.1} parent=1 // pred_check
      _
    $region7: #{tpu_custom_call.1} parent=1 // pred_check_branch
      %24 = sbr.rel (0) target = $region9
    $region8: #{tpu_custom_call.1} parent=1 // pred_region
      %26 = vsyncadd [#allocation7], 0
      %s28 = sshll.u32 %s1, 4
      %s29 = int_to_ptr.hbm [resolvable:$true] %s28
      %s30 = sshll.u32 [#allocation6], 4
      %s31 = int_to_ptr.vmem [resolvable:$true] %s30
      %33 = dma.hbm_to_vmem [thread:$0]  %s29, 128, %s31, [#allocation7]
    $region9: #{tpu_custom_call.1} parent=1 // pred_fallthru
      _
    // Predicated region
    $region10: #{tpu_custom_call.1} parent=1 // pred_check
      _
    $region11: #{tpu_custom_call.1} parent=1 // pred_check_branch
      %35 = sbr.rel (0) target = $region13
    $region12: #{tpu_custom_call.1} parent=1 // pred_region
      _
    $region13: #{tpu_custom_call.1} parent=1 // pred_fallthru
      _
    // Predicated region
    $region14: #{tpu_custom_call.1} parent=1 // pred_check
      _
    $region15: #{tpu_custom_call.1} parent=1 // pred_check_branch
      %37 = sbr.rel (0) target = $region17
    $region16: #{tpu_custom_call.1} parent=1 // pred_region
      %39 = dma.done [#allocation4], 128
    $region17: #{tpu_custom_call.1} parent=1 // pred_fallthru
      _
    // Predicated region
    $region18: #{tpu_custom_call.1} parent=1 // pred_check
      _
    $region19: #{tpu_custom_call.1} parent=1 // pred_check_branch
      %41 = sbr.rel (0) target = $region21
    $region20: #{tpu_custom_call.1} parent=1 // pred_region
      %43 = dma.done [#allocation7], 128
    $region21: #{tpu_custom_call.1} parent=1 // pred_fallthru
      _
    %v44 = vld [vmem:[#allocation6] sm:$0xff]
    %v45 = vld [vmem:[#allocation3] sm:$0xff]
    %vm46 = vcmask 261120
    %v48 = vsel %vm46, %v44, 0
    %v51 = vsel %vm46, %v45, 0
    %53 = vmatpush.xpose.msra.mxu0 0.0
    %54 = vmatpush.xpose.msra.mxu0 0.0
    %55 = vmatpush.xpose.msra.mxu0 0.0
    %56 = vmatpush.xpose.msra.mxu0 0.0
    %57 = vmatpush.xpose.msra.mxu0 0.0
    %58 = vmatpush.xpose.msra.mxu0 0.0
    %59 = vmatpush.xpose.msra.mxu0 0.0
    %60 = vmatpush.xpose.msra.mxu0 0.0
    %61 = vmatpush.xpose.msra.mxu0 0.0
    %62 = vmatpush.xpose.msra.mxu0 0.0
    %63 = vmatpush.xpose.msra.mxu0 0.0
    %64 = vmatpush.xpose.msra.mxu0 0.0
    %65 = vmatpush.xpose.msra.mxu0 0.0
    %66 = vmatpush.xpose.msra.mxu0 0.0
    %67 = vmatpush.xpose.msra.mxu0 0.0
    %68 = vmatpush.xpose.msra.mxu0 %v51
    %69 = vmatmul.f32.gmra.mxu0 %v48
    %v70 = vpop.f32.mrf.mxu0
    %v71 = vadd.f32 0.0, %v70
    %72 = vdwg.mxu0
    %s73 = sld [smem:[#allocation2]]
    %v74 = vstv %s73
    %v75 = vadd.f32 %v71, %v74
    %v76 = vxor.u32 %v75, 2147483648
    %v77 = vmul.f32 %v76, 1.442695
    %v78 = vpow.pop %v77
    %v79 = vadd.f32 %v78, 1.0
    %v80 = vrcp.pop %v79
    %v81 = vmul.f32 %v79, %v80
    %v82 = vsub.f32 1.0, %v81
    %v83 = vmul.f32 %v80, %v82
    %v84 = vadd.f32 %v80, %v83
    %vm85 = vweird.f32 %v79
    %vm86 = vweird.f32 %v80
    %vm87 = vmor %vm85, %vm86
    %v88 = vsel %vm87, %v80, %v84
    %v89 = vand.u32 2147483647, %v79
    %vm90 = vcmp.eq.f32.partialorder %v89, 8.507059e+37
    %v91 = vand.u32 %v79, 2147483648
    %v92 = vor.u32 1.1754944e-38, %v91
    %v93 = vsel %vm90, %v92, %v88
    %v94 = vmul.f32 1.0, %v93
    %vm95 = vcmask 57344
    %96 = vst.msk [vmem:[#allocation8] sm:$0x1] %vm95, %v94
    // Predicated region
    $region22: #{tpu_custom_call.1} parent=1 // pred_check
      _
    $region23: #{tpu_custom_call.1} parent=1 // pred_check_branch
      %98 = sbr.rel (0) target = $region25
    $region24: #{tpu_custom_call.1} parent=1 // pred_region
      %100 = vsyncadd [#allocation5], 0
      %s102 = sshll.u32 [#allocation8], 4
      %s103 = int_to_ptr.vmem [resolvable:$true] %s102
      %s104 = sshll.u32 %s3, 4
      %s105 = int_to_ptr.hbm [resolvable:$true] %s104
      %107 = dma.vmem_to_hbm [thread:$0]  %s103, 16, %s105, [#allocation5]
    $region25: #{tpu_custom_call.1} parent=1 // pred_fallthru
      _
    // Predicated region
    $region26: #{tpu_custom_call.1} parent=1 // pred_check
      _
    $region27: #{tpu_custom_call.1} parent=1 // pred_check_branch
      %109 = sbr.rel (0) target = $region29
    $region28: #{tpu_custom_call.1} parent=1 // pred_region
      %111 = dma.done [#allocation5], 16
    $region29: #{tpu_custom_call.1} parent=1 // pred_fallthru
      _
    %112 = vsyncpa [#allocation4], 1
    %113 = vsyncpa [#allocation7], 1
    %114 = vsyncpa [#allocation5], 1

</llo_original>
